<compile_context>
chip_gen: v7x
topology: tpu7x:2x2x1
jax: 0.10.0
libtpu: 0.0.40
codegen_flags: <defaults>
</compile_context>

<pallas_src>
import functools

import jax
import jax.numpy as jnp
from jax.experimental import pallas as pl
from jax.experimental.pallas import tpu as pltpu


_TILE_BYTES = 4 * 1024 * 1024      # per-operand-half, per-buffer VMEM tile budget
_VMEM_LIMIT = 48 * 1024 * 1024     # raised scoped-VMEM limit (fits v5e/v6e/v7x)
_MIN_GRID_STEPS = 4                # enough steps for megacore + pipeline overlap


def _sublane_unit(dtype) -> int:
    size = jnp.dtype(dtype).itemsize
    if size >= 4:
        return 8
    if size == 2:
        return 16
    return 32


def _round_down(x: int, unit: int) -> int:
    return max(unit, (x // unit) * unit)


def _compiler_params(n_axes: int):
    return pltpu.CompilerParams(
        dimension_semantics=("parallel",) * n_axes,
        vmem_limit_bytes=_VMEM_LIMIT,
    )


def _gate(a, g, out_dtype):
    # f32 intermediate for sub-f32 dtypes (PyTorch-like precision; free here).
    if jnp.dtype(a.dtype).itemsize < 4:
        a = a.astype(jnp.float32)
        g = g.astype(jnp.float32)
    return (a * jax.nn.sigmoid(g)).astype(out_dtype)


def _glu_kernel_split(a_ref, g_ref, o_ref):
    """Lane-aligned path: a / gate halves arrive as separate blocks."""
    o_ref[...] = _gate(a_ref[...], g_ref[...], o_ref.dtype)


def _glu_kernel_fused(x_ref, o_ref, *, m: int):
    """Unaligned path: full row arrives once; split in VMEM (lane shift only)."""
    x = x_ref[...]
    o_ref[...] = _gate(x[:, :m], x[:, m:], o_ref.dtype)


def _pick_bpre(pre: int, tile_elems: int, lane_elems: int, unit: int) -> int:
    bpre = max(1, tile_elems // max(1, lane_elems))
    if bpre >= pre:
        return pre
    if bpre > unit:
        bpre = _round_down(bpre, unit)
    return max(1, bpre)


def _ensure_min_steps(pre: int, bpre: int, col_blocks: int, unit: int) -> int:
    """Shrink the row block (never the lane block) until the grid has enough steps."""
    while pl.cdiv(pre, bpre) * col_blocks < _MIN_GRID_STEPS and bpre > unit:
        smaller = _round_down(bpre // 2, unit)
        if smaller >= bpre:
            break
        bpre = smaller
    return bpre


def _largest_lane_block(m: int, cap: int) -> int:
    """Largest multiple-of-128 divisor of m (m % 128 == 0) that is <= cap."""
    if m <= cap:
        return m
    k = m // 128
    for d in range(min(k, max(1, cap // 128)), 0, -1):
        if k % d == 0:
            return 128 * d
    return 128


def _glu_2d(x2, pre: int, m: int, dtype):
    itemsize = jnp.dtype(dtype).itemsize
    tile_elems = max(128, _TILE_BYTES // itemsize)
    unit = _sublane_unit(dtype)

    if m % 128 == 0:
        # Lane-aligned split: pass x2 twice; the gate spec offsets its column
        # block index by m // bm.  No extra HBM traffic, unmasked lane-dense
        # loads/stores, wide contiguous DMA rows.
        lane_cap = max(128, tile_elems // unit)
        bm = _largest_lane_block(m, lane_cap)
        ncb = m // bm
        bpre = _pick_bpre(pre, tile_elems, bm, unit)
        bpre = _ensure_min_steps(pre, bpre, ncb, unit)
        grid = (pl.cdiv(pre, bpre), ncb)
        return pl.pallas_call(
            _glu_kernel_split,
            out_shape=jax.ShapeDtypeStruct((pre, m), dtype),
            grid_spec=pltpu.PrefetchScalarGridSpec(
                num_scalar_prefetch=0,
                grid=grid,
                in_specs=[
                    pl.BlockSpec((bpre, bm), lambda i, j: (i, j)),        # a half
                    pl.BlockSpec((bpre, bm), lambda i, j: (i, j + ncb)),  # gate half
                ],
                out_specs=pl.BlockSpec((bpre, bm), lambda i, j: (i, j)),
            ),
            compiler_params=_compiler_params(2),
        )(x2, x2)

    # Unaligned split point: pass full rows once (block last dim == full array
    # dim, always legal) and split inside the kernel.  No wrapper slices, so
    # no extra HBM pass; halves input DMA descriptors and input VMEM.
    bpre = _pick_bpre(pre, tile_elems, m, unit)
    bpre = _ensure_min_steps(pre, bpre, 1, unit)
    grid = (pl.cdiv(pre, bpre),)
    return pl.pallas_call(
        functools.partial(_glu_kernel_fused, m=m),
        out_shape=jax.ShapeDtypeStruct((pre, m), dtype),
        grid_spec=pltpu.PrefetchScalarGridSpec(
            num_scalar_prefetch=0,
            grid=grid,
            in_specs=[pl.BlockSpec((bpre, 2 * m), lambda i: (i, 0))],
            out_specs=pl.BlockSpec((bpre, m), lambda i: (i, 0)),
        ),
        compiler_params=_compiler_params(1),
    )(x2)


@functools.partial(jax.jit, static_argnames=("dim",))
def glu(x: jax.Array, dim: int) -> jax.Array:
    """Pallas GLU: a, g = split(x, 2, dim); return a * sigmoid(g)."""
    ndim = x.ndim
    dim = dim % ndim
    two_c = x.shape[dim]
    if two_c % 2 != 0:
        raise ValueError("GLU split axis must be even")
    c = two_c // 2

    pre = 1
    for s in x.shape[:dim]:
        pre *= s
    post = 1
    for s in x.shape[dim + 1:]:
        post *= s
    m = c * post
    out_shape = x.shape[:dim] + (c,) + x.shape[dim + 1:]

    # Both halves of the split axis are contiguous within every `pre` row, so
    # this reshape (and the output reshape) is free; every `dim` becomes the
    # 2-D trailing-axis case with the split point at column m.
    x2 = x.reshape(pre, 2 * m)
    out = _glu_2d(x2, pre, m, x.dtype)
    return out.reshape(out_shape)


def glu_ref(x: jax.Array, dim: int) -> jax.Array:
    a, g = jnp.split(x, 2, axis=dim)
    return a * jax.nn.sigmoid(g)


if __name__ == "__main__":
    key = jax.random.PRNGKey(0)
    k1, k2, k3, k4 = jax.random.split(key, 4)

    # 1) Typical ASR/conformer usage: GLU(dim=1) on (batch, 2*channels, seq).
    x1 = jax.random.normal(k1, (2, 8, 16), dtype=jnp.float32)
    o1 = jax.block_until_ready(glu(x1, dim=1))
    assert o1.shape == (2, 4, 16), o1.shape
    assert jnp.allclose(o1, glu_ref(x1, 1), atol=1e-5, rtol=1e-5), "dim=1 mismatch"

    # 2) Last-axis split with small/unaligned C (fused full-row path).
    x2 = jax.random.normal(k2, (2, 16, 32), dtype=jnp.float32)
    o2 = jax.block_until_ready(glu(x2, dim=-1))
    assert o2.shape == (2, 16, 16), o2.shape
    assert jnp.allclose(o2, glu_ref(x2, -1), atol=1e-5, rtol=1e-5), "dim=-1 mismatch"

    # 3) Last-axis split with lane-aligned C (block-index-offset path).
    x3 = jax.random.normal(k3, (8, 256), dtype=jnp.float32)
    o3 = jax.block_until_ready(glu(x3, dim=-1))
    assert o3.shape == (8, 128), o3.shape
    assert jnp.allclose(o3, glu_ref(x3, -1), atol=1e-5, rtol=1e-5), "aligned mismatch"

    # 4) bf16 input exercises the f32 intermediate and 16-sublane rounding.
    x4 = jax.random.normal(k4, (4, 8, 128), dtype=jnp.bfloat16)
    o4 = jax.block_until_ready(glu(x4, dim=1))
    assert o4.shape == (4, 4, 128), o4.shape
    assert jnp.allclose(o4.astype(jnp.float32),
                        glu_ref(x4, 1).astype(jnp.float32),
                        atol=2e-2, rtol=2e-2), "bf16 mismatch"

    print("KERNEL_OK")
</pallas_src>

<mosaic_0001>
module attributes {stable_mosaic.version = 11 : i64} {
  func.func @_glu_kernel_fused(%arg0: i32, %arg1: memref<2x128xf32, #tpu.memory_space<vmem>>, %arg2: memref<2x64xf32, #tpu.memory_space<vmem>>) attributes {dimension_semantics = [#tpu.dimension_semantics<parallel>], iteration_bounds = array<i64: 1>, scalar_prefetch = 0 : i64, scratch_operands = 0 : i64, tpu.core_type = #tpu.core_type<tc>, window_params = [{transform_indices = @transform_0, window_bounds = array<i64: 2, 128>}, {transform_indices = @transform_1, window_bounds = array<i64: 2, 64>}]} {
    %c0 = arith.constant 0 : index
    %c0_0 = arith.constant 0 : index
    %0 = vector.load %arg1[%c0, %c0_0] : memref<2x128xf32, #tpu.memory_space<vmem>>, vector<2x128xf32>
    %1 = vector.extract_strided_slice %0 {offsets = [0, 0], sizes = [2, 64], strides = [1, 1]} : vector<2x128xf32> to vector<2x64xf32>
    %2 = vector.extract_strided_slice %0 {offsets = [0, 64], sizes = [2, 64], strides = [1, 1]} : vector<2x128xf32> to vector<2x64xf32>
    %3 = arith.negf %2 : vector<2x64xf32>
    %4 = math.exp %3 : vector<2x64xf32>
    %cst = arith.constant 1.000000e+00 : f32
    %5 = vector.broadcast %cst : f32 to vector<2x64xf32>
    %6 = arith.addf %5, %4 : vector<2x64xf32>
    %7 = arith.divf %5, %6 : vector<2x64xf32>
    %8 = arith.mulf %1, %7 : vector<2x64xf32>
    %c0_1 = arith.constant 0 : index
    %c0_2 = arith.constant 0 : index
    %9 = vector.load %arg2[%c0_1, %c0_2] : memref<2x64xf32, #tpu.memory_space<vmem>>, vector<2x64xf32>
    tpu.vector_store %arg2[%c0_1, %c0_2], %8 {strides = array<i32>} : memref<2x64xf32, #tpu.memory_space<vmem>>, vector<2x64xf32>,
    return
  }
  func.func @transform_0(%arg0: i32) -> (i32, i32) {
    %c0_i32 = arith.constant 0 : i32
    %c0_i32_0 = arith.constant 0 : i32
    return %arg0, %c0_i32 : i32, i32
  }
  func.func @transform_1(%arg0: i32) -> (i32, i32) {
    %c0_i32 = arith.constant 0 : i32
    %c0_i32_0 = arith.constant 0 : i32
    return %arg0, %c0_i32 : i32, i32
  }
}

</mosaic_0001>

<llo_original>
// kernel: glu.1
$region0: #{glu.1}
  #allocation0 [shape = 'u32[]', space=smem, size = 0x4, offset = 0x4, fixed_abs, tag = 'smem constant byte address 0x4 - core index']
  #allocation1 [shape = 'u32[144,128]{1,0:T(1,128)}', space=vmem, size = 0x12000, scoped, tag = 'internal scratch']
  %s0 = inlined_call_operand.vmem [shape: f32[2,128], index: 0, kind: input, shape index: {}]
  %s1 = inlined_call_operand.vmem [shape: f32[2,64], index: 1, kind: output, shape index: {}]
  %s2 = sld [smem:[#allocation0]]
  $region14: #{glu.1} parent=0
    _
  %s4 = ssub.s32 1, %s2
  %s5 = scalar_select 0, %s4, %s2
  // Predicated region
  $region2: #{glu.1} parent=0 // pred_check
    _
  $region3: #{glu.1} parent=0 // pred_check_branch
    %7 = sbr.rel (0) target = $region5
  $region4: #{glu.1} parent=0 // pred_region
    _
  $region5: #{glu.1} parent=0 // pred_fallthru
    _
  %v8 = vld [vmem:[%s0] sm:$0x3]
  %v9 = vxor.u32 %v8, 2147483648
  %v10 = vmul.f32 %v9, 1.442695
  %v11 = vpow.pop %v10
  %v12 = vadd.f32 %v11, 1.0
  %v13 = vrcp.pop %v12
  %v14 = vmul.f32 1.0, %v13
  %16 = vrot.lane.b32.xlu0 %v14, 64
  %v17 = vpop.permute.xlu0 %16
  %v19 = vmul.f32 %v8, %v17
  %vm20 = vcmask 517120
  %21 = vst.msk [vmem:[%s1] sm:$0x3] %vm20, %v19
  // Predicated region
  $region6: #{glu.1} parent=0 // pred_check
    _
  $region7: #{glu.1} parent=0 // pred_check_branch
    %23 = sbr.rel (0) target = $region9
  $region8: #{glu.1} parent=0 // pred_region
    _
  $region9: #{glu.1} parent=0 // pred_fallthru
    _
  // Predicated region
  $region10: #{glu.1} parent=0 // pred_check
    _
  $region11: #{glu.1} parent=0 // pred_check_branch
    %25 = sbr.rel (0) target = $region13
  $region12: #{glu.1} parent=0 // pred_region
    _
  $region13: #{glu.1} parent=0 // pred_fallthru
    _

</llo_original>
